<compile_context>
chip_gen: v5e
topology: v5e:2x2
jax: 0.10.0
libtpu: 0.0.40
codegen_flags: <defaults>
</compile_context>

<pallas_src>
import math
from functools import partial

import jax
import jax.numpy as jnp
from jax import lax
from jax.experimental import pallas as pl
from jax.experimental.pallas import tpu as pltpu

INTER = 32                      # inter_channel in the PyTorch module
BIG = 1e30                      # finite "+inf" used for masking
SENT = 2 ** 31 - 1              # int32 sentinel for the packed kNN keys


# ---------------------------------------------------------------------------
# Generation-aware tiling / VMEM budget
# ---------------------------------------------------------------------------
def _device_kind():
    try:
        return jax.devices()[0].device_kind.lower()
    except Exception:
        return ""


_KIND = _device_kind()
_IS_V5E = ("v5 lite" in _KIND) or ("v5e" in _KIND) or ("v5litepod" in _KIND)


def _vmem_limit_bytes():
    cap = 128 * 1024 * 1024
    try:
        cap = int(pltpu.get_tpu_info().vmem_capacity_bytes)
    except Exception:
        pass
    # ~48 MiB on v7x (64 MiB physical), ~96 MiB on v5e/v6e (128 MiB physical)
    return max(32 * 1024 * 1024, min((cap * 3) // 4, 96 * 1024 * 1024))


VMEM_LIMIT = _vmem_limit_bytes()


def _cparams(sem):
    return pltpu.CompilerParams(dimension_semantics=sem,
                                vmem_limit_bytes=VMEM_LIMIT)


def _row_tile(n):
    """Row tile: 128 on v5e (4x128 MXU), 256 on v6e/v7x, or one 8-aligned
    tile covering everything for tiny inputs."""
    base = 128 if _IS_V5E else 256
    if n >= base:
        return base
    if n >= 128:
        return 128
    return max(8, ((n + 7) // 8) * 8)


def _grow_tile(tm, n_pad, cap):
    tk = tm
    while tk * 2 <= min(cap, n_pad) and n_pad % (tk * 2) == 0:
        tk *= 2
    return tk


# ---------------------------------------------------------------------------
# Glue: per-row graph segment bounds -> per-query-tile key-tile ranges
# (batch ids are contiguous, so the matching key rows form one interval)
# ---------------------------------------------------------------------------
def _segment_bounds(bat):
    n = bat.shape[0]
    pos = jnp.arange(n, dtype=jnp.int32)
    is_start = jnp.concatenate([jnp.array([True]), bat[1:] != bat[:-1]])
    seg_start = lax.associative_scan(jnp.maximum, jnp.where(is_start, pos, 0))
    is_end = jnp.concatenate([bat[1:] != bat[:-1], jnp.array([True])])
    rev = jnp.where(is_end, pos, n - 1)[::-1]
    seg_end = lax.associative_scan(jnp.minimum, rev)[::-1]
    return seg_start, seg_end


def _tile_kv_ranges(seg_start, seg_end, tm, tk):
    lo = jnp.min(seg_start.reshape(-1, tm), axis=1) // tk
    hi = jnp.max(seg_end.reshape(-1, tm), axis=1) // tk
    return lo.astype(jnp.int32), hi.astype(jnp.int32)


# ---------------------------------------------------------------------------
# Kernel 1: kNN — key-tiled masked distances + running packed-key top-k.
# Distances quantized by dropping the low idx_bits mantissa bits so that one
# int32 min-reduce per selection step yields both the distance and the index
# (bf16-level ranking precision, ties broken by lowest index).
# ---------------------------------------------------------------------------
def _knn_kernel(lo_ref, hi_ref, xq_ref, bq_ref, xk_ref, sqk_ref, bk_ref,
                idx_ref, best_sc, *, k, idx_bits):
    i = pl.program_id(0)
    j = pl.program_id(1)
    tm = xq_ref.shape[0]
    tk = xk_ref.shape[0]
    mask_idx = (1 << idx_bits) - 1

    @pl.when(j == 0)
    def _init():
        best_sc[...] = jnp.full(best_sc.shape, SENT, jnp.int32)

    lo = lo_ref[i]
    hi = hi_ref[i]

    @pl.when(jnp.logical_and(j >= lo, j <= hi))
    def _merge():
        xq = xq_ref[...]                                    # bf16 (TM, D)
        xk = xk_ref[...]                                    # bf16 (TK, D)
        gram = lax.dot_general(xq, xk, (((1,), (1,)), ((), ())),
                               preferred_element_type=jnp.float32)
        sq_i = jnp.sum(xq.astype(jnp.float32) ** 2, axis=1, keepdims=True)
        dist = jnp.clip(sq_i + sqk_ref[...] - 2.0 * gram, 0.0, BIG)
        same = bq_ref[...] == bk_ref[...]                   # (TM, TK)
        col = j * tk + lax.broadcasted_iota(jnp.int32, (tm, tk), 1)
        bits = pltpu.bitcast(dist, jnp.int32)               # monotone (dist>=0)
        key = (bits & jnp.int32(~mask_idx)) | col           # pack idx in low bits
        key = jnp.where(same, key, jnp.int32(SENT))

        pool = jnp.concatenate([best_sc[...], key], axis=-1)   # (TM, k+TK)
        colk = lax.broadcasted_iota(jnp.int32, (tm, k), 1)
        newbest = jnp.zeros((tm, k), jnp.int32)
        for t in range(k):                                   # k small & static
            kmin = jnp.min(pool, axis=-1, keepdims=True)     # one reduce/step
            newbest = jnp.where(colk == t, kmin, newbest)
            pool = jnp.where(pool == kmin, jnp.int32(SENT), pool)
        best_sc[...] = newbest

    @pl.when(j == pl.num_programs(1) - 1)
    def _fin():
        # exhausted slots (graph smaller than k) fall back to self -> zero edge
        row = i * tm + lax.broadcasted_iota(jnp.int32, (tm, k), 0)
        best = best_sc[...]
        idx_ref[...] = jnp.where(best == SENT, row, best & jnp.int32(mask_idx))


def knn_indices(xb, bcol, brow, sqk, kv_lo, kv_hi, k, tm, tk):
    n_pad, din = xb.shape
    idx_bits = max(1, (n_pad - 1).bit_length())

    def cl(i, j, lo, hi):
        return jnp.maximum(lo[i], jnp.minimum(j, hi[i]))

    return pl.pallas_call(
        partial(_knn_kernel, k=k, idx_bits=idx_bits),
        out_shape=jax.ShapeDtypeStruct((n_pad, k), jnp.int32),
        grid_spec=pltpu.PrefetchScalarGridSpec(
            num_scalar_prefetch=2,
            grid=(n_pad // tm, n_pad // tk),
            in_specs=[
                pl.BlockSpec((tm, din), lambda i, j, lo, hi: (i, 0)),
                pl.BlockSpec((tm, 1), lambda i, j, lo, hi: (i, 0)),
                pl.BlockSpec((tk, din), lambda i, j, lo, hi: (cl(i, j, lo, hi), 0)),
                pl.BlockSpec((1, tk), lambda i, j, lo, hi: (0, cl(i, j, lo, hi))),
                pl.BlockSpec((1, tk), lambda i, j, lo, hi: (0, cl(i, j, lo, hi))),
            ],
            out_specs=pl.BlockSpec((tm, k), lambda i, j, lo, hi: (i, 0)),
            scratch_shapes=[pltpu.VMEM((tm, k), jnp.int32)],
        ),
        compiler_params=_cparams(("parallel", "arbitrary")),
    )(kv_lo, kv_hi, xb, bcol, xb, sqk, brow)


# ---------------------------------------------------------------------------
# Kernel 2: y2 = x @ W2   (bf16 MXU, f32 out — gathered by neighbours later)
# ---------------------------------------------------------------------------
def _proj_w2_kernel(x_ref, w2_ref, y2_ref):
    y2_ref[...] = jnp.dot(x_ref[...], w2_ref[...],
                          preferred_element_type=jnp.float32)


def proj_w2(xb, w2, tm):
    n_pad, din = xb.shape
    dout = w2.shape[1]
    return pl.pallas_call(
        _proj_w2_kernel,
        out_shape=jax.ShapeDtypeStruct((n_pad, dout), jnp.float32),
        grid=(n_pad // tm,),
        in_specs=[pl.BlockSpec((tm, din), lambda i: (i, 0)),
                  pl.BlockSpec((din, dout), lambda i: (0, 0))],
        out_specs=pl.BlockSpec((tm, dout), lambda i: (i, 0)),
        compiler_params=_cparams(("parallel",)),
    )(xb, w2)


# ---------------------------------------------------------------------------
# Kernel 3: EdgeConv combine (x@W1 + b + edge) fused with Q/K/V projections.
# y1 is never materialized in HBM; q is pre-scaled by 1/sqrt(dh); q/k/v bf16.
# ---------------------------------------------------------------------------
def _qkv_kernel(x_ref, edge_ref, cf_ref, w1_ref, b1_ref, wq_ref, bq_ref,
                wk_ref, bk_ref, wv_ref, bv_ref,
                xq_ref, q_ref, k_ref, v_ref, *, scale):
    xq = (jnp.dot(x_ref[...], w1_ref[...], preferred_element_type=jnp.float32)
          + b1_ref[...] + edge_ref[...])                    # EdgeConv output
    xq_ref[...] = xq                                        # residual / next layer
    xqb = xq.astype(jnp.bfloat16)
    cfb = cf_ref[...]                                       # bf16 already
    q = jnp.dot(xqb, wq_ref[...], preferred_element_type=jnp.float32) + bq_ref[...]
    q_ref[...] = (q * scale).astype(jnp.bfloat16)
    kk = jnp.dot(cfb, wk_ref[...], preferred_element_type=jnp.float32) + bk_ref[...]
    k_ref[...] = kk.astype(jnp.bfloat16)
    vv = jnp.dot(cfb, wv_ref[...], preferred_element_type=jnp.float32) + bv_ref[...]
    v_ref[...] = vv.astype(jnp.bfloat16)


def qkv_proj(xb, edge, cf, w1, b1, wq, bq, wk, bk, wv, bv, scale, tm):
    n_pad, din = xb.shape
    d = w1.shape[1]
    ckv = cf.shape[1]
    return pl.pallas_call(
        partial(_qkv_kernel, scale=scale),
        out_shape=(jax.ShapeDtypeStruct((n_pad, d), jnp.float32),   # xq
                   jax.ShapeDtypeStruct((n_pad, d), jnp.bfloat16),  # q
                   jax.ShapeDtypeStruct((n_pad, d), jnp.bfloat16),  # k
                   jax.ShapeDtypeStruct((n_pad, d), jnp.bfloat16)),  # v
        grid=(n_pad // tm,),
        in_specs=[
            pl.BlockSpec((tm, din), lambda i: (i, 0)),
            pl.BlockSpec((tm, d), lambda i: (i, 0)),
            pl.BlockSpec((tm, ckv), lambda i: (i, 0)),
            pl.BlockSpec((din, d), lambda i: (0, 0)),
            pl.BlockSpec((1, d), lambda i: (0, 0)),
            pl.BlockSpec((d, d), lambda i: (0, 0)),
            pl.BlockSpec((1, d), lambda i: (0, 0)),
            pl.BlockSpec((ckv, d), lambda i: (0, 0)),
            pl.BlockSpec((1, d), lambda i: (0, 0)),
            pl.BlockSpec((ckv, d), lambda i: (0, 0)),
            pl.BlockSpec((1, d), lambda i: (0, 0)),
        ],
        out_specs=(pl.BlockSpec((tm, d), lambda i: (i, 0)),
                   pl.BlockSpec((tm, d), lambda i: (i, 0)),
                   pl.BlockSpec((tm, d), lambda i: (i, 0)),
                   pl.BlockSpec((tm, d), lambda i: (i, 0))),
        compiler_params=_cparams(("parallel",)),
    )(xb, edge, cf, w1, b1, wq, bq, wk, bk, wv, bv)


# ---------------------------------------------------------------------------
# Kernel 4: flash-style multi-head cross attention, block-diagonal aware.
# Key tiles outside the query tile's graph range are neither DMA'd (clamped
# index_map -> block reuse) nor computed (pl.when).  Output projection, bias
# and the residual add are fused into the epilogue.
# TODO(synk): MultiHeadCrossAttention source not provided; implemented as
# scaled-dot-product MHA (points = queries, radar channel features = K/V)
# masked so attention stays inside each graph of the batch.
# ---------------------------------------------------------------------------
def _flash_attn_kernel(lo_ref, hi_ref, bq_ref, bk_ref, q_ref, k_ref, v_ref,
                       xq_ref, wo_ref, bo_ref, o_ref, m_sc, l_sc, acc_sc,
                       *, num_heads):
    i = pl.program_id(0)
    j = pl.program_id(1)
    d = q_ref.shape[1]
    dh = d // num_heads
    neg = jnp.float32(-1e30)
    lo = lo_ref[i]
    hi = hi_ref[i]

    @pl.when(j == 0)
    def _init():
        m_sc[...] = jnp.full(m_sc.shape, neg, jnp.float32)
        l_sc[...] = jnp.zeros(l_sc.shape, jnp.float32)
        acc_sc[...] = jnp.zeros(acc_sc.shape, jnp.float32)

    @pl.when(jnp.logical_and(j >= lo, j <= hi))
    def _compute():
        mask = bq_ref[...] == bk_ref[...]                   # (TM, TK)
        q = q_ref[...]                                      # bf16, pre-scaled
        kk = k_ref[...]
        vv = v_ref[...]
        parts = []
        for h in range(num_heads):
            sl = slice(h * dh, (h + 1) * dh)
            s = lax.dot_general(q[:, sl], kk[:, sl], (((1,), (1,)), ((), ())),
                                preferred_element_type=jnp.float32)
            s = jnp.where(mask, s, neg)
            m_old = m_sc[h]
            m_new = jnp.maximum(m_old, jnp.max(s, axis=-1, keepdims=True))
            alpha = jnp.exp(m_old - m_new)
            # second mask is load-bearing for rows whose graph has no keys in
            # this (partially overlapping) key tile — keep it.
            p = jnp.where(mask, jnp.exp(s - m_new), 0.0)
            l_sc[h] = alpha * l_sc[h] + jnp.sum(p, axis=-1, keepdims=True)
            m_sc[h] = m_new
            parts.append(alpha * acc_sc[:, sl]
                         + jnp.dot(p.astype(jnp.bfloat16), vv[:, sl],
                                   preferred_element_type=jnp.float32))
        # single full-width store, no lane-sliced RMW on the accumulator
        acc_sc[...] = parts[0] if num_heads == 1 else jnp.concatenate(parts, -1)

    @pl.when(j == pl.num_programs(1) - 1)
    def _fin():
        parts = []
        for h in range(num_heads):
            sl = slice(h * dh, (h + 1) * dh)
            inv = pl.reciprocal(l_sc[h], approx=True)        # EUP slot
            parts.append(acc_sc[:, sl] * inv)
        attn = (parts[0] if num_heads == 1
                else jnp.concatenate(parts, -1)).astype(jnp.bfloat16)
        o_ref[...] = (jnp.dot(attn, wo_ref[...],
                              preferred_element_type=jnp.float32)
                      + bo_ref[...] + xq_ref[...])           # + residual


def flash_cross_attention(q, k, v, xq, bcol, brow, wo, bo, kv_lo, kv_hi,
                          num_heads, tm, tk):
    n_pad, d = q.shape
    assert d % num_heads == 0

    def cl(i, j, lo, hi):
        return jnp.maximum(lo[i], jnp.minimum(j, hi[i]))

    return pl.pallas_call(
        partial(_flash_attn_kernel, num_heads=num_heads),
        out_shape=jax.ShapeDtypeStruct((n_pad, d), jnp.float32),
        grid_spec=pltpu.PrefetchScalarGridSpec(
            num_scalar_prefetch=2,
            grid=(n_pad // tm, n_pad // tk),
            in_specs=[
                pl.BlockSpec((tm, 1), lambda i, j, lo, hi: (i, 0)),
                pl.BlockSpec((1, tk), lambda i, j, lo, hi: (0, cl(i, j, lo, hi))),
                pl.BlockSpec((tm, d), lambda i, j, lo, hi: (i, 0)),
                pl.BlockSpec((tk, d), lambda i, j, lo, hi: (cl(i, j, lo, hi), 0)),
                pl.BlockSpec((tk, d), lambda i, j, lo, hi: (cl(i, j, lo, hi), 0)),
                pl.BlockSpec((tm, d), lambda i, j, lo, hi: (i, 0)),
                pl.BlockSpec((d, d), lambda i, j, lo, hi: (0, 0)),
                pl.BlockSpec((1, d), lambda i, j, lo, hi: (0, 0)),
            ],
            out_specs=pl.BlockSpec((tm, d), lambda i, j, lo, hi: (i, 0)),
            scratch_shapes=[pltpu.VMEM((num_heads, tm, 1), jnp.float32),  # m
                            pltpu.VMEM((num_heads, tm, 1), jnp.float32),  # l
                            pltpu.VMEM((tm, d), jnp.float32)],            # acc
        ),
        compiler_params=_cparams(("parallel", "arbitrary")),
    )(kv_lo, kv_hi, bcol, brow, q, k, v, xq, wo, bo)


# ---------------------------------------------------------------------------
# Kernel 5: final Linear + ELU
# ---------------------------------------------------------------------------
def _linear_elu_kernel(x_ref, w_ref, b_ref, out_ref):
    z = jnp.dot(x_ref[...].astype(jnp.bfloat16), w_ref[...],
                preferred_element_type=jnp.float32) + b_ref[...]
    out_ref[...] = jnp.where(z > 0.0, z, jnp.exp(jnp.minimum(z, 0.0)) - 1.0)


def linear_elu(x, w, b, tm):
    n_pad, din = x.shape
    dout = w.shape[1]
    return pl.pallas_call(
        _linear_elu_kernel,
        out_shape=jax.ShapeDtypeStruct((n_pad, dout), jnp.float32),
        grid=(n_pad // tm,),
        in_specs=[pl.BlockSpec((tm, din), lambda i: (i, 0)),
                  pl.BlockSpec((din, dout), lambda i: (0, 0)),
                  pl.BlockSpec((1, dout), lambda i: (0, 0))],
        out_specs=pl.BlockSpec((tm, dout), lambda i: (i, 0)),
        compiler_params=_cparams(("parallel",)),
    )(x, w, b)


# ---------------------------------------------------------------------------
# Parameter init (PyTorch nn.Linear default U(+-1/sqrt(fan_in))); matmul
# weights are pre-cast to bf16 ONCE here (not per forward call).
# ---------------------------------------------------------------------------
def init_linear(key, fan_in, fan_out):
    kw, kb = jax.random.split(key)
    bound = 1.0 / math.sqrt(fan_in)
    w = jax.random.uniform(kw, (fan_in, fan_out), jnp.float32, -bound, bound)
    b = jax.random.uniform(kb, (fan_out,), jnp.float32, -bound, bound)
    return w, b


def init_params(key, radar_in, feat_out_channels, gcn_out):
    keys = jax.random.split(key, 32)
    ki = iter(keys)
    bf = jnp.bfloat16
    params = {}
    dims_in = [radar_in, INTER, INTER * 2, INTER * 4, INTER * 8]
    dims_out = [INTER, INTER * 2, INTER * 4, INTER * 8, INTER * 16]
    for l in range(5):
        din = dims_in[l]
        w, b = init_linear(next(ki), din * 2, dims_out[l])
        params[f"dg{l}"] = (w[:din].astype(bf), w[din:].astype(bf),
                            b.reshape(1, -1))
        dq, dkv, do = dims_out[l], feat_out_channels[l], dims_out[l]
        wq, bq = init_linear(next(ki), dq, do)
        wk, bk = init_linear(next(ki), dkv, do)
        wv, bv = init_linear(next(ki), dkv, do)
        wo, bo = init_linear(next(ki), do, do)
        params[f"att{l}"] = (wq.astype(bf), bq.reshape(1, -1),
                             wk.astype(bf), bk.reshape(1, -1),
                             wv.astype(bf), bv.reshape(1, -1),
                             wo.astype(bf), bo.reshape(1, -1))
    w, b = init_linear(next(ki), INTER * 31, gcn_out)
    params["lin1"] = (w.astype(bf), b.reshape(1, -1))
    return params


# ---------------------------------------------------------------------------
# Forward pass (mirrors Attention_enhanced_DGCNN.forward)
# ---------------------------------------------------------------------------
def forward(params, x_full, batch, radar_channels, k, num_heads):
    n = x_full.shape[0]
    tm = _row_tile(n)
    n_pad = ((n + tm - 1) // tm) * tm
    pad = n_pad - n
    xf = jnp.pad(x_full, ((0, pad), (0, 0)))
    bat = jnp.pad(batch.astype(jnp.int32), (0, pad), constant_values=-1)
    bcol = bat.reshape(n_pad, 1)
    brow = bat.reshape(1, n_pad)

    tk_att = _grow_tile(tm, n_pad, 128 if _IS_V5E else 512)
    tk_knn = _grow_tile(tm, n_pad, 1024)
    seg_start, seg_end = _segment_bounds(bat)
    knn_lo, knn_hi = _tile_kv_ranges(seg_start, seg_end, tm, tk_knn)
    att_lo, att_hi = _tile_kv_ranges(seg_start, seg_end, tm, tk_att)

    # cast the K/V feature pyramids to bf16 once per forward
    radar_bf = [r.astype(jnp.bfloat16) for r in radar_channels]

    x = xf[:, :-2]
    radar2d = xf[:, -2:]
    xs = []
    scale = 2
    for l in range(5):
        w1, w2, b1 = params[f"dg{l}"]
        xb = x.astype(jnp.bfloat16)                          # cast once per layer
        sqk = jnp.sum(xb.astype(jnp.float32) ** 2, axis=1)[None, :]

        idx = knn_indices(xb, bcol, brow, sqk, knn_lo, knn_hi,
                          k, tm, tk_knn)                     # Pallas (tiled kNN)
        y2 = proj_w2(xb, w2, tm)                             # Pallas

        # TODO(synk): data-dependent neighbour row gather kept in XLA glue;
        # streaming max over the k slots avoids the (Np,k,D) intermediate.
        nb = jnp.take(y2, idx[:, 0], axis=0)
        for j in range(1, k):
            nb = jnp.maximum(nb, jnp.take(y2, idx[:, j], axis=0))
        edge = nb - y2                                       # max_j x_j@W2 - x_i@W2

        px = jnp.trunc(radar2d[:, 0] / scale).astype(jnp.int32)
        py = jnp.trunc(radar2d[:, 1] / scale).astype(jnp.int32)
        # TODO(synk): NCHW pixel gather (data dependent) kept in XLA glue.
        # Padded rows (batch == -1) wrap to the last graph; harmless since the
        # padding is sliced off at the end.
        cf = radar_bf[l][bat, :, py, px]                     # (Np, C_l) bf16

        wq, bq, wk, bk, wv, bv, wo, bo = params[f"att{l}"]
        d = w1.shape[1]
        sc = 1.0 / math.sqrt(d // num_heads)
        xq, q, kk, vv = qkv_proj(xb, edge, cf, w1, b1, wq, bq, wk, bk,
                                 wv, bv, sc, tm)             # Pallas (fused)
        x = flash_cross_attention(q, kk, vv, xq, bcol, brow, wo, bo,
                                  att_lo, att_hi, num_heads, tm, tk_att)
        xs.append(x)
        scale *= 2

    feat = jnp.concatenate(xs, axis=1)                       # (Np, 32*31)
    w, b = params["lin1"]
    out = linear_elu(feat, w, b, tm)                         # Pallas
    return out[:n]


# ---------------------------------------------------------------------------
if __name__ == "__main__":
    key = jax.random.PRNGKey(0)
    B, PTS = 2, 16                   # 2 graphs, 16 points each
    N = B * PTS
    RADAR_IN = 4                     # params.radar_gcn_channel_in
    K = 4                            # params.k
    NUM_HEADS = 4                    # params.num_heads
    FEAT_OUT = [8, 16, 32, 64, 128]  # radar_encoder.feat_out_channels
    GCN_OUT = 64                     # params.radar_gcn_channel_out
    H = W = 64                       # radar image resolution

    kx, kc, kp, k0, k1, k2, k3, k4 = jax.random.split(key, 8)
    feats = jax.random.normal(kx, (N, RADAR_IN), jnp.float32)
    coords = jax.random.uniform(kc, (N, 2), jnp.float32, 0.0, float(W) - 1.0)
    x_full = jnp.concatenate([feats, coords], axis=1)        # data.x
    batch = jnp.repeat(jnp.arange(B, dtype=jnp.int32), PTS)  # data.batch

    rc_keys = [k0, k1, k2, k3, k4]
    radar_channels = []
    for i, c in enumerate(FEAT_OUT):
        s = 2 ** (i + 1)
        radar_channels.append(
            jax.random.normal(rc_keys[i], (B, c, H // s, W // s), jnp.float32))

    params = init_params(kp, RADAR_IN, FEAT_OUT, GCN_OUT)

    out = forward(params, x_full, batch, radar_channels, K, NUM_HEADS)
    out = jax.block_until_ready(out)
    assert out.shape == (N, GCN_OUT), out.shape
    assert jnp.all(jnp.isfinite(out))
    print("KERNEL_OK")
</pallas_src>

<mosaic_0001>
module attributes {stable_mosaic.version = 11 : i64} {
  func.func @_knn_kernel(%arg0: i32, %arg1: i32, %arg2: memref<1xi32, #tpu.memory_space<smem>>, %arg3: memref<1xi32, #tpu.memory_space<smem>>, %arg4: memref<32x4xbf16, #tpu.memory_space<vmem>>, %arg5: memref<32x1xi32, #tpu.memory_space<vmem>>, %arg6: memref<32x4xbf16, #tpu.memory_space<vmem>>, %arg7: memref<1x32xf32, #tpu.memory_space<vmem>>, %arg8: memref<1x32xi32, #tpu.memory_space<vmem>>, %arg9: memref<32x4xi32, #tpu.memory_space<vmem>>, %arg10: memref<32x4xi32, #tpu.memory_space<vmem>>) attributes {dimension_semantics = [#tpu.dimension_semantics<parallel>, #tpu.dimension_semantics<arbitrary>], iteration_bounds = array<i64: 1, 1>, scalar_prefetch = 2 : i64, scratch_operands = 1 : i64, tpu.core_type = #tpu.core_type<tc>, window_params = [{transform_indices = @transform_0, window_bounds = array<i64: 32, 4>}, {transform_indices = @transform_1, window_bounds = array<i64: 32, 1>}, {transform_indices = @transform_2, window_bounds = array<i64: 32, 4>}, {transform_indices = @transform_3, window_bounds = array<i64: 1, 32>}, {transform_indices = @transform_4, window_bounds = array<i64: 1, 32>}, {transform_indices = @transform_5, window_bounds = array<i64: 32, 4>}]} {
    %c0_i32 = arith.constant 0 : i32
    %0 = arith.cmpi eq, %arg1, %c0_i32 : i32
    %1 = arith.extui %0 : i1 to i32
    %c0_i32_0 = arith.constant 0 : i32
    %2 = arith.cmpi ne, %1, %c0_i32_0 : i32
    scf.if %2 {
      %c2147483647_i32 = arith.constant 2147483647 : i32
      %15 = vector.broadcast %c2147483647_i32 : i32 to vector<32x4xi32>
      %c0 = arith.constant 0 : index
      %c0_4 = arith.constant 0 : index
      %16 = vector.load %arg10[%c0, %c0_4] : memref<32x4xi32, #tpu.memory_space<vmem>>, vector<32x4xi32>
      tpu.vector_store %arg10[%c0, %c0_4], %15 {strides = array<i32>} : memref<32x4xi32, #tpu.memory_space<vmem>>, vector<32x4xi32>,
    } else {
    }
    %3 = arith.index_cast %arg0 : i32 to index
    %4 = memref.load %arg2[%3] : memref<1xi32, #tpu.memory_space<smem>>
    %5 = arith.index_cast %arg0 : i32 to index
    %6 = memref.load %arg3[%5] : memref<1xi32, #tpu.memory_space<smem>>
    %7 = arith.cmpi sge, %arg1, %4 : i32
    %8 = arith.cmpi sle, %arg1, %6 : i32
    %9 = arith.andi %7, %8 : i1
    %10 = arith.extui %9 : i1 to i32
    %c0_i32_1 = arith.constant 0 : i32
    %11 = arith.cmpi ne, %10, %c0_i32_1 : i32
    scf.if %11 {
      %c0 = arith.constant 0 : index
      %c0_4 = arith.constant 0 : index
      %15 = vector.load %arg4[%c0, %c0_4] : memref<32x4xbf16, #tpu.memory_space<vmem>>, vector<32x4xbf16>
      %c0_5 = arith.constant 0 : index
      %c0_6 = arith.constant 0 : index
      %16 = vector.load %arg6[%c0_5, %c0_6] : memref<32x4xbf16, #tpu.memory_space<vmem>>, vector<32x4xbf16>
      %cst = arith.constant dense<0.000000e+00> : vector<32x32xf32>
      %17 = tpu.matmul %15, %16, %cst {dimension_numbers = #tpu.dot_dimension_numbers<[1], [1], [0], [0], [0, 0, 1, 0], [], []>} : vector<32x4xbf16>, vector<32x4xbf16>, vector<32x32xf32> -> vector<32x32xf32>
      %18 = arith.extf %15 : vector<32x4xbf16> to vector<32x4xf32>
      %19 = arith.mulf %18, %18 : vector<32x4xf32>
      %cst_7 = arith.constant dense<0.000000e+00> : vector<32xf32>
      %20 = vector.multi_reduction <add>, %19, %cst_7 [1] : vector<32x4xf32> to vector<32xf32>
      %21 = vector.shape_cast %20 : vector<32xf32> to vector<32x1xf32>
      %c0_8 = arith.constant 0 : index
      %c0_9 = arith.constant 0 : index
      %22 = vector.load %arg7[%c0_8, %c0_9] : memref<1x32xf32, #tpu.memory_space<vmem>>, vector<1x32xf32>
      %23 = vector.broadcast %21 : vector<32x1xf32> to vector<32x32xf32>
      %24 = vector.broadcast %22 : vector<1x32xf32> to vector<32x32xf32>
      %25 = arith.addf %23, %24 : vector<32x32xf32>
      %cst_10 = arith.constant 2.000000e+00 : f32
      %26 = vector.broadcast %cst_10 : f32 to vector<32x32xf32>
      %27 = arith.mulf %26, %17 : vector<32x32xf32>
      %28 = arith.subf %25, %27 : vector<32x32xf32>
      %cst_11 = arith.constant 0.000000e+00 : f32
      %cst_12 = arith.constant 1.000000e+30 : f32
      %29 = vector.broadcast %cst_11 : f32 to vector<32x32xf32>
      %30 = arith.maximumf %29, %28 : vector<32x32xf32>
      %31 = vector.broadcast %cst_12 : f32 to vector<32x32xf32>
      %32 = arith.minimumf %31, %30 : vector<32x32xf32>
      %c0_13 = arith.constant 0 : index
      %c0_14 = arith.constant 0 : index
      %33 = vector.load %arg5[%c0_13, %c0_14] : memref<32x1xi32, #tpu.memory_space<vmem>>, vector<32x1xi32>
      %c0_15 = arith.constant 0 : index
      %c0_16 = arith.constant 0 : index
      %34 = vector.load %arg8[%c0_15, %c0_16] : memref<1x32xi32, #tpu.memory_space<vmem>>, vector<1x32xi32>
      %35 = vector.broadcast %33 : vector<32x1xi32> to vector<32x32xi32>
      %36 = vector.broadcast %34 : vector<1x32xi32> to vector<32x32xi32>
      %37 = arith.cmpi eq, %35, %36 : vector<32x32xi32>
      %c32_i32 = arith.constant 32 : i32
      %38 = arith.muli %arg1, %c32_i32 : i32
      %39 = tpu.iota {dimensions = array<i32: 1>} : vector<32x32xi32>
      %40 = vector.broadcast %38 : i32 to vector<32x32xi32>
      %41 = arith.addi %40, %39 : vector<32x32xi32>
      %42 = tpu.bitcast %32 : vector<32x32xf32> -> vector<32x32xi32>
      %c-32_i32 = arith.constant -32 : i32
      %43 = vector.broadcast %c-32_i32 : i32 to vector<32x32xi32>
      %44 = arith.andi %42, %43 : vector<32x32xi32>
      %45 = arith.ori %44, %41 : vector<32x32xi32>
      %c2147483647_i32 = arith.constant 2147483647 : i32
      %46 = vector.broadcast %c2147483647_i32 : i32 to vector<32x32xi32>
      %47 = arith.select %37, %45, %46 : vector<32x32xi1>, vector<32x32xi32>
      %c0_17 = arith.constant 0 : index
      %c0_18 = arith.constant 0 : index
      %48 = vector.load %arg10[%c0_17, %c0_18] : memref<32x4xi32, #tpu.memory_space<vmem>>, vector<32x4xi32>
      %49 = tpu.concatenate %48, %47 in 1 : vector<32x4xi32>, vector<32x32xi32> -> vector<32x36xi32>
      %50 = tpu.iota {dimensions = array<i32: 1>} : vector<32x4xi32>
      %c0_i32_19 = arith.constant 0 : i32
      %51 = vector.broadcast %c0_i32_19 : i32 to vector<32x4xi32>
      %cst_20 = arith.constant dense<2147483647> : vector<32xi32>
      %52 = vector.multi_reduction <minsi>, %49, %cst_20 [1] : vector<32x36xi32> to vector<32xi32>
      %53 = vector.shape_cast %52 : vector<32xi32> to vector<32x1xi32>
      %c0_i32_21 = arith.constant 0 : i32
      %54 = vector.broadcast %c0_i32_21 : i32 to vector<32x4xi32>
      %55 = arith.cmpi eq, %50, %54 : vector<32x4xi32>
      %56 = vector.shape_cast %53 : vector<32x1xi32> to vector<32x1xi32>
      %57 = vector.broadcast %56 : vector<32x1xi32> to vector<32x4xi32>
      %58 = arith.select %55, %57, %51 : vector<32x4xi1>, vector<32x4xi32>
      %59 = vector.broadcast %53 : vector<32x1xi32> to vector<32x36xi32>
      %60 = arith.cmpi eq, %49, %59 : vector<32x36xi32>
      %c2147483647_i32_22 = arith.constant 2147483647 : i32
      %61 = vector.broadcast %c2147483647_i32_22 : i32 to vector<32x36xi32>
      %62 = arith.select %60, %61, %49 : vector<32x36xi1>, vector<32x36xi32>
      %cst_23 = arith.constant dense<2147483647> : vector<32xi32>
      %63 = vector.multi_reduction <minsi>, %62, %cst_23 [1] : vector<32x36xi32> to vector<32xi32>
      %64 = vector.shape_cast %63 : vector<32xi32> to vector<32x1xi32>
      %c1_i32 = arith.constant 1 : i32
      %65 = vector.broadcast %c1_i32 : i32 to vector<32x4xi32>
      %66 = arith.cmpi eq, %50, %65 : vector<32x4xi32>
      %67 = vector.shape_cast %64 : vector<32x1xi32> to vector<32x1xi32>
      %68 = vector.broadcast %67 : vector<32x1xi32> to vector<32x4xi32>
      %69 = arith.select %66, %68, %58 : vector<32x4xi1>, vector<32x4xi32>
      %70 = vector.broadcast %64 : vector<32x1xi32> to vector<32x36xi32>
      %71 = arith.cmpi eq, %62, %70 : vector<32x36xi32>
      %c2147483647_i32_24 = arith.constant 2147483647 : i32
      %72 = vector.broadcast %c2147483647_i32_24 : i32 to vector<32x36xi32>
      %73 = arith.select %71, %72, %62 : vector<32x36xi1>, vector<32x36xi32>
      %cst_25 = arith.constant dense<2147483647> : vector<32xi32>
      %74 = vector.multi_reduction <minsi>, %73, %cst_25 [1] : vector<32x36xi32> to vector<32xi32>
      %75 = vector.shape_cast %74 : vector<32xi32> to vector<32x1xi32>
      %c2_i32 = arith.constant 2 : i32
      %76 = vector.broadcast %c2_i32 : i32 to vector<32x4xi32>
      %77 = arith.cmpi eq, %50, %76 : vector<32x4xi32>
      %78 = vector.shape_cast %75 : vector<32x1xi32> to vector<32x1xi32>
      %79 = vector.broadcast %78 : vector<32x1xi32> to vector<32x4xi32>
      %80 = arith.select %77, %79, %69 : vector<32x4xi1>, vector<32x4xi32>
      %81 = vector.broadcast %75 : vector<32x1xi32> to vector<32x36xi32>
      %82 = arith.cmpi eq, %73, %81 : vector<32x36xi32>
      %c2147483647_i32_26 = arith.constant 2147483647 : i32
      %83 = vector.broadcast %c2147483647_i32_26 : i32 to vector<32x36xi32>
      %84 = arith.select %82, %83, %73 : vector<32x36xi1>, vector<32x36xi32>
      %cst_27 = arith.constant dense<2147483647> : vector<32xi32>
      %85 = vector.multi_reduction <minsi>, %84, %cst_27 [1] : vector<32x36xi32> to vector<32xi32>
      %86 = vector.shape_cast %85 : vector<32xi32> to vector<32x1xi32>
      %c3_i32 = arith.constant 3 : i32
      %87 = vector.broadcast %c3_i32 : i32 to vector<32x4xi32>
      %88 = arith.cmpi eq, %50, %87 : vector<32x4xi32>
      %89 = vector.shape_cast %86 : vector<32x1xi32> to vector<32x1xi32>
      %90 = vector.broadcast %89 : vector<32x1xi32> to vector<32x4xi32>
      %91 = arith.select %88, %90, %80 : vector<32x4xi1>, vector<32x4xi32>
      %c0_28 = arith.constant 0 : index
      %c0_29 = arith.constant 0 : index
      %92 = vector.load %arg10[%c0_28, %c0_29] : memref<32x4xi32, #tpu.memory_space<vmem>>, vector<32x4xi32>
      tpu.vector_store %arg10[%c0_28, %c0_29], %91 {strides = array<i32>} : memref<32x4xi32, #tpu.memory_space<vmem>>, vector<32x4xi32>,
    } else {
    }
    %c0_i32_2 = arith.constant 0 : i32
    %12 = arith.cmpi eq, %arg1, %c0_i32_2 : i32
    %13 = arith.extui %12 : i1 to i32
    %c0_i32_3 = arith.constant 0 : i32
    %14 = arith.cmpi ne, %13, %c0_i32_3 : i32
    scf.if %14 {
      %c32_i32 = arith.constant 32 : i32
      %15 = arith.muli %arg0, %c32_i32 : i32
      %16 = tpu.iota {dimensions = array<i32: 0>} : vector<32x4xi32>
      %17 = vector.broadcast %15 : i32 to vector<32x4xi32>
      %18 = arith.addi %17, %16 : vector<32x4xi32>
      %c0 = arith.constant 0 : index
      %c0_4 = arith.constant 0 : index
      %19 = vector.load %arg10[%c0, %c0_4] : memref<32x4xi32, #tpu.memory_space<vmem>>, vector<32x4xi32>
      %c2147483647_i32 = arith.constant 2147483647 : i32
      %20 = vector.broadcast %c2147483647_i32 : i32 to vector<32x4xi32>
      %21 = arith.cmpi eq, %19, %20 : vector<32x4xi32>
      %c31_i32 = arith.constant 31 : i32
      %22 = vector.broadcast %c31_i32 : i32 to vector<32x4xi32>
      %23 = arith.andi %19, %22 : vector<32x4xi32>
      %24 = arith.select %21, %18, %23 : vector<32x4xi1>, vector<32x4xi32>
      %c0_5 = arith.constant 0 : index
      %c0_6 = arith.constant 0 : index
      %25 = vector.load %arg9[%c0_5, %c0_6] : memref<32x4xi32, #tpu.memory_space<vmem>>, vector<32x4xi32>
      tpu.vector_store %arg9[%c0_5, %c0_6], %24 {strides = array<i32>} : memref<32x4xi32, #tpu.memory_space<vmem>>, vector<32x4xi32>,
    } else {
    }
    return
  }
  func.func @transform_0(%arg0: i32, %arg1: i32, %arg2: memref<1xi32, #tpu.memory_space<smem>>, %arg3: memref<1xi32, #tpu.memory_space<smem>>) -> (i32, i32) {
    %c0_i32 = arith.constant 0 : i32
    %c0_i32_0 = arith.constant 0 : i32
    return %arg0, %c0_i32 : i32, i32
  }
  func.func @transform_1(%arg0: i32, %arg1: i32, %arg2: memref<1xi32, #tpu.memory_space<smem>>, %arg3: memref<1xi32, #tpu.memory_space<smem>>) -> (i32, i32) {
    %c0_i32 = arith.constant 0 : i32
    %c0_i32_0 = arith.constant 0 : i32
    return %arg0, %c0_i32 : i32, i32
  }
  func.func @transform_2(%arg0: i32, %arg1: i32, %arg2: memref<1xi32, #tpu.memory_space<smem>>, %arg3: memref<1xi32, #tpu.memory_space<smem>>) -> (i32, i32) {
    %0 = arith.index_cast %arg0 : i32 to index
    %1 = memref.load %arg2[%0] : memref<1xi32, #tpu.memory_space<smem>>
    %2 = arith.index_cast %arg0 : i32 to index
    %3 = memref.load %arg3[%2] : memref<1xi32, #tpu.memory_space<smem>>
    %4 = arith.minsi %arg1, %3 : i32
    %5 = arith.maxsi %1, %4 : i32
    %c0_i32 = arith.constant 0 : i32
    %c0_i32_0 = arith.constant 0 : i32
    return %5, %c0_i32 : i32, i32
  }
  func.func @transform_3(%arg0: i32, %arg1: i32, %arg2: memref<1xi32, #tpu.memory_space<smem>>, %arg3: memref<1xi32, #tpu.memory_space<smem>>) -> (i32, i32) {
    %0 = arith.index_cast %arg0 : i32 to index
    %1 = memref.load %arg2[%0] : memref<1xi32, #tpu.memory_space<smem>>
    %2 = arith.index_cast %arg0 : i32 to index
    %3 = memref.load %arg3[%2] : memref<1xi32, #tpu.memory_space<smem>>
    %4 = arith.minsi %arg1, %3 : i32
    %5 = arith.maxsi %1, %4 : i32
    %c0_i32 = arith.constant 0 : i32
    %c0_i32_0 = arith.constant 0 : i32
    return %c0_i32, %5 : i32, i32
  }
  func.func @transform_4(%arg0: i32, %arg1: i32, %arg2: memref<1xi32, #tpu.memory_space<smem>>, %arg3: memref<1xi32, #tpu.memory_space<smem>>) -> (i32, i32) {
    %0 = arith.index_cast %arg0 : i32 to index
    %1 = memref.load %arg2[%0] : memref<1xi32, #tpu.memory_space<smem>>
    %2 = arith.index_cast %arg0 : i32 to index
    %3 = memref.load %arg3[%2] : memref<1xi32, #tpu.memory_space<smem>>
    %4 = arith.minsi %arg1, %3 : i32
    %5 = arith.maxsi %1, %4 : i32
    %c0_i32 = arith.constant 0 : i32
    %c0_i32_0 = arith.constant 0 : i32
    return %c0_i32, %5 : i32, i32
  }
  func.func @transform_5(%arg0: i32, %arg1: i32, %arg2: memref<1xi32, #tpu.memory_space<smem>>, %arg3: memref<1xi32, #tpu.memory_space<smem>>) -> (i32, i32) {
    %c0_i32 = arith.constant 0 : i32
    %c0_i32_0 = arith.constant 0 : i32
    return %arg0, %c0_i32 : i32, i32
  }
}

</mosaic_0001>

<llo_original>
// kernel: tpu_custom_call.1
$region0: #{tpu_custom_call.1}
  #allocation0 [shape = 'u32[]', space=smem, size = 0x4, offset = 0x4, fixed_abs, tag = 'smem constant byte address 0x4 - core index']
  #allocation1 [shape = 'u32[72,128]{1,0:T(1,128)}', space=vmem, size = 0x9000, scoped, tag = 'internal scratch']
  #allocation2 [shape = 's32[32,4]{1,0:T(8,128)}', space=vmem, size = 0x4000, scoped, tag = 'scratch operand']
  #allocation3 [shape = 's32[1]{0}', space=sflag, size = 0x4, scoped, tag = 'scoped memory for tpu_custom_call.1']
  #allocation4 [shape = 's32[1]{0:T(128)S(6)}', space=smem, size = 0x200, scoped, tag = 'prefetched SMEM operand 0']
  #allocation5 [shape = 's32[1]{0:T(128)S(6)}', space=smem, size = 0x200, scoped, tag = 'prefetched SMEM operand 1']
  %s0 = inlined_call_operand.<no memory space> [shape: s32[1], index: 0, kind: input, shape index: {}]
  %s1 = inlined_call_operand.<no memory space> [shape: s32[1], index: 1, kind: input, shape index: {}]
  %s2 = inlined_call_operand.vmem [shape: bf16[32,4], index: 2, kind: input, shape index: {}]
  %s3 = inlined_call_operand.vmem [shape: s32[32,1], index: 3, kind: input, shape index: {}]
  %s4 = inlined_call_operand.vmem [shape: bf16[32,4], index: 4, kind: input, shape index: {}]
  %s5 = inlined_call_operand.vmem [shape: f32[1,32], index: 5, kind: input, shape index: {}]
  %s6 = inlined_call_operand.vmem [shape: s32[1,32], index: 6, kind: input, shape index: {}]
  %s7 = inlined_call_operand.vmem [shape: s32[32,4], index: 7, kind: output, shape index: {}]
  %s8 = sld [smem:[#allocation0]]
  $region42: #{tpu_custom_call.1} parent=0
    _
  %s10 = ssub.s32 1, %s8
  %s11 = scalar_select 0, %s10, %s8
  %12 = sst [smem:[#allocation4]] %s0
  %13 = sst [smem:[#allocation5]] %s1
  // Predicated region
  $region2: #{tpu_custom_call.1} parent=0 // pred_check
    _
  $region3: #{tpu_custom_call.1} parent=0 // pred_check_branch
    %15 = sbr.rel (0) target = $region5
  $region4: #{tpu_custom_call.1} parent=0 // pred_region
    _
  $region5: #{tpu_custom_call.1} parent=0 // pred_fallthru
    _
  // Predicated region
  $region6: #{tpu_custom_call.1} parent=0 // pred_check
    _
  $region7: #{tpu_custom_call.1} parent=0 // pred_check_branch
    %17 = sbr.rel (0) target = $region9
  $region8: #{tpu_custom_call.1} parent=0 // pred_region
    _
  $region9: #{tpu_custom_call.1} parent=0 // pred_fallthru
    _
  // Predicated region
  $region10: #{tpu_custom_call.1} parent=0 // pred_check
    _
  $region11: #{tpu_custom_call.1} parent=0 // pred_check_branch
    %19 = sbr.rel (0) target = $region13
  $region12: #{tpu_custom_call.1} parent=0 // pred_region
    %s20 = sld [smem:[#allocation4]]
    %s21 = sld [smem:[#allocation5]]
    %p22 = scmp.lt.s32.totalorder 0, %s21
    %s23 = scalar_select %p22, 0, %s21
    %p24 = scmp.gt.s32.totalorder %s20, %s23
    %s25 = scalar_select %p24, %s20, %s23
    %s26 = smul.u32 4, %s25
    %p27 = scmp.lt.s32.totalorder %s26, 3
    %s28 = scalar_select %p27, %s26, 3
    %s29 = smul.addr %s28, 4
    %s30 = scalar_lea.vmem %s4, %s29
    %s31 = sld [smem:[#allocation4]]
    %s32 = sld [smem:[#allocation5]]
    %p33 = scmp.lt.s32.totalorder 0, %s32
    %s34 = scalar_select %p33, 0, %s32
    %p35 = scmp.gt.s32.totalorder %s31, %s34
    %s36 = scalar_select %p35, %s31, %s34
    %s37 = smul.u32 4, %s36
  $region13: #{tpu_custom_call.1} parent=0 // pred_fallthru
    _
  // Predicated region
  $region14: #{tpu_custom_call.1} parent=0 // pred_check
    _
  $region15: #{tpu_custom_call.1} parent=0 // pred_check_branch
    %39 = sbr.rel (0) target = $region17
  $region16: #{tpu_custom_call.1} parent=0 // pred_region
    %s40 = sld [smem:[#allocation4]]
    %s41 = sld [smem:[#allocation5]]
    %p42 = scmp.lt.s32.totalorder 0, %s41
    %s43 = scalar_select %p42, 0, %s41
    %p44 = scmp.gt.s32.totalorder %s40, %s43
    %s45 = scalar_select %p44, %s40, %s43
    %p46 = scmp.lt.s32.totalorder %s45, 0
    %s47 = scalar_select %p46, %s45, 0
    %s48 = scalar_lea.vmem %s5, %s47
    %s49 = sld [smem:[#allocation4]]
    %s50 = sld [smem:[#allocation5]]
    %p51 = scmp.lt.s32.totalorder 0, %s50
    %s52 = scalar_select %p51, 0, %s50
    %p53 = scmp.gt.s32.totalorder %s49, %s52
    %s54 = scalar_select %p53, %s49, %s52
  $region17: #{tpu_custom_call.1} parent=0 // pred_fallthru
    _
  // Predicated region
  $region18: #{tpu_custom_call.1} parent=0 // pred_check
    _
  $region19: #{tpu_custom_call.1} parent=0 // pred_check_branch
    %56 = sbr.rel (0) target = $region21
  $region20: #{tpu_custom_call.1} parent=0 // pred_region
    %s57 = sld [smem:[#allocation4]]
    %s58 = sld [smem:[#allocation5]]
    %p59 = scmp.lt.s32.totalorder 0, %s58
    %s60 = scalar_select %p59, 0, %s58
    %p61 = scmp.gt.s32.totalorder %s57, %s60
    %s62 = scalar_select %p61, %s57, %s60
    %p63 = scmp.lt.s32.totalorder %s62, 0
    %s64 = scalar_select %p63, %s62, 0
    %s65 = scalar_lea.vmem %s6, %s64
    %s66 = sld [smem:[#allocation4]]
    %s67 = sld [smem:[#allocation5]]
    %p68 = scmp.lt.s32.totalorder 0, %s67
    %s69 = scalar_select %p68, 0, %s67
    %p70 = scmp.gt.s32.totalorder %s66, %s69
    %s71 = scalar_select %p70, %s66, %s69
  $region21: #{tpu_custom_call.1} parent=0 // pred_fallthru
    _
  %s72 = sld [smem:[#allocation4]]
  %s73 = sld [smem:[#allocation5]]
  %p74 = scmp.lt.s32.totalorder 0, %s73
  %s75 = scalar_select %p74, 0, %s73
  %p76 = scmp.gt.s32.totalorder %s72, %s75
  %s77 = scalar_select %p76, %s72, %s75
  %s78 = smul.u32 4, %s77
  %p79 = scmp.lt.s32.totalorder %s78, 3
  %s80 = scalar_select %p79, %s78, 3
  %s81 = smul.addr %s80, 4
  %s82 = scalar_lea.vmem %s4, %s81
  %s83 = sld [smem:[#allocation4]]
  %s84 = sld [smem:[#allocation5]]
  %p85 = scmp.lt.s32.totalorder 0, %s84
  %s86 = scalar_select %p85, 0, %s84
  %p87 = scmp.gt.s32.totalorder %s83, %s86
  %s88 = scalar_select %p87, %s83, %s86
  %p89 = scmp.lt.s32.totalorder %s88, 0
  %s90 = scalar_select %p89, %s88, 0
  %s91 = scalar_lea.vmem %s5, %s90
  %s92 = sld [smem:[#allocation4]]
  %s93 = sld [smem:[#allocation5]]
  %p94 = scmp.lt.s32.totalorder 0, %s93
  %s95 = scalar_select %p94, 0, %s93
  %p96 = scmp.gt.s32.totalorder %s92, %s95
  %s97 = scalar_select %p96, %s92, %s95
  %p98 = scmp.lt.s32.totalorder %s97, 0
  %s99 = scalar_select %p98, %s97, 0
  %s100 = scalar_lea.vmem %s6, %s99
  %s101 = sld [smem:[#allocation4]]
  %s102 = sld [smem:[#allocation5]]
  %p103 = scmp.lt.s32.totalorder 0, %s102
  %s104 = scalar_select %p103, 0, %s102
  %p105 = scmp.gt.s32.totalorder %s101, %s104
  %s106 = scalar_select %p105, %s101, %s104
  %s107 = smul.u32 4, %s106
  %p108 = scmp.lt.s32.totalorder %s107, 3
  %s109 = scalar_select %p108, %s107, 3
  %s110 = smul.addr %s109, 4
  %s111 = scalar_lea.vmem %s4, %s110
  %s112 = sld [smem:[#allocation4]]
  %s113 = sld [smem:[#allocation5]]
  %p114 = scmp.lt.s32.totalorder 0, %s113
  %s115 = scalar_select %p114, 0, %s113
  %p116 = scmp.gt.s32.totalorder %s112, %s115
  %s117 = scalar_select %p116, %s112, %s115
  %s118 = smul.u32 4, %s117
  %s119 = sld [smem:[#allocation4]]
  %s120 = sld [smem:[#allocation5]]
  %p121 = scmp.lt.s32.totalorder 0, %s120
  %s122 = scalar_select %p121, 0, %s120
  %p123 = scmp.gt.s32.totalorder %s119, %s122
  %s124 = scalar_select %p123, %s119, %s122
  %p125 = scmp.lt.s32.totalorder %s124, 0
  %s126 = scalar_select %p125, %s124, 0
  %s127 = scalar_lea.vmem %s5, %s126
  %s128 = sld [smem:[#allocation4]]
  %s129 = sld [smem:[#allocation5]]
  %p130 = scmp.lt.s32.totalorder 0, %s129
  %s131 = scalar_select %p130, 0, %s129
  %p132 = scmp.gt.s32.totalorder %s128, %s131
  %s133 = scalar_select %p132, %s128, %s131
  %s134 = sld [smem:[#allocation4]]
  %s135 = sld [smem:[#allocation5]]
  %p136 = scmp.lt.s32.totalorder 0, %s135
  %s137 = scalar_select %p136, 0, %s135
  %p138 = scmp.gt.s32.totalorder %s134, %s137
  %s139 = scalar_select %p138, %s134, %s137
  %p140 = scmp.lt.s32.totalorder %s139, 0
  %s141 = scalar_select %p140, %s139, 0
  %s142 = scalar_lea.vmem %s6, %s141
  %s143 = sld [smem:[#allocation4]]
  %s144 = sld [smem:[#allocation5]]
  %p145 = scmp.lt.s32.totalorder 0, %s144
  %s146 = scalar_select %p145, 0, %s144
  %p147 = scmp.gt.s32.totalorder %s143, %s146
  %s148 = scalar_select %p147, %s143, %s146
  %p150 = scmp.eq.s32.totalorder 0, 0
  // Predicated region
  $region22: #{tpu_custom_call.1} parent=0 // pred_check
    %p151 = pneg %p150
  $region23: #{tpu_custom_call.1} parent=0 // pred_check_branch
    %153 = sbr.rel (%p151) target = $region25
  $region24: #{tpu_custom_call.1} parent=0 // pred_region
    %vm154 = vcmask 31744
    %155 = vst.msk [vmem:[#allocation2] sm:$0xff] %vm154, 2147483647
    %156 = vst.msk [vmem:[#allocation2 + $0x8] sm:$0xff] %vm154, 2147483647
    %157 = vst.msk [vmem:[#allocation2 + $0x10] sm:$0xff] %vm154, 2147483647
    %158 = vst.msk [vmem:[#allocation2 + $0x18] sm:$0xff] %vm154, 2147483647
  $region25: #{tpu_custom_call.1} parent=0 // pred_fallthru
    _
  %s159 = sld [smem:[#allocation4]]
  %s160 = sld [smem:[#allocation5]]
  %p161 = scmp.ge.s32.totalorder 0, %s159
  %p162 = scmp.le.s32.totalorder 0, %s160
  %p163 = pnand %p161, %p162
  %p164 = pneg %p163
  // Predicated region
  $region26: #{tpu_custom_call.1} parent=0 // pred_check
    _
  $region27: #{tpu_custom_call.1} parent=0 // pred_check_branch
    %166 = sbr.rel (%p163) target = $region29
  $region28: #{tpu_custom_call.1} parent=0 // pred_region
    %v167 = vld [vmem:[%s2] sm:$0xf]
    %v168 = vld [vmem:[%s2 + $0x4] sm:$0xf]
    %v169 = vld [vmem:[%s2 + $0x8] sm:$0xf]
    %v170 = vld [vmem:[%s2 + $0xc] sm:$0xf]
    %v171 = vld [vmem:[%s111] sm:$0xf]
    %v172 = vld [vmem:[%s111 + $0x4] sm:$0xf]
    %v173 = vld [vmem:[%s111 + $0x8] sm:$0xf]
    %v174 = vld [vmem:[%s111 + $0xc] sm:$0xf]
    %v179 = vunpack.c.l.b16 %v167
    %v180 = vunpack.c.l.b16 %v168
    %v181 = vunpack.c.l.b16 %v169
    %v182 = vunpack.c.l.b16 %v170
    %v183 = vpack.c.b16 %v180, %v179
    %v184 = vpack.c.b16 %v182, %v181
    %v189 = vunpack.c.l.b16 %v171
    %v190 = vunpack.c.l.b16 %v172
    %v191 = vunpack.c.l.b16 %v173
    %v192 = vunpack.c.l.b16 %v174
    %v193 = vpack.c.b16 %v190, %v189
    %v194 = vpack.c.b16 %v192, %v191
    %vm195 = vcmask 31744
    %v197 = vsel %vm195, %v183, 0
    %v200 = vsel %vm195, %v184, 0
    %v203 = vsel %vm195, %v193, 0
    %v206 = vsel %vm195, %v194, 0
    %208 = vmatpush.bf16.xpose.msra.mxu0 0
    %209 = vmatpush.bf16.xpose.msra.mxu0 0
    %210 = vmatpush.bf16.xpose.msra.mxu0 0
    %211 = vmatpush.bf16.xpose.msra.mxu0 0
    %212 = vmatpush.bf16.xpose.msra.mxu0 0
    %213 = vmatpush.bf16.xpose.msra.mxu0 0
    %214 = vmatpush.bf16.xpose.msra.mxu0 %v206
    %215 = vmatpush.bf16.xpose.msra.mxu0 %v203
    %216 = vmatmul.bf16.gmra.mxu0 %v197
    %v217 = vpop.f32.mrf.mxu0
    %v218 = vadd.f32 0.0, %v217
    %v219 = vpop.f32.mrf.mxu0
    %v220 = vadd.f32 0.0, %v219
    %221 = vmatmul.bf16.gmra.mxu0 %v200
    %v222 = vpop.f32.mrf.mxu0
    %v223 = vadd.f32 0.0, %v222
    %v224 = vpop.f32.mrf.mxu0
    %v225 = vadd.f32 0.0, %v224
    %226 = vdwg.mxu0
    %v227 = vunpack.c.l.bf16 %v167
    %v228 = vunpack.c.l.bf16 %v168
    %v229 = vunpack.c.l.bf16 %v169
    %v230 = vunpack.c.l.bf16 %v170
    %v231 = vmul.f32 %v227, %v227
    %v232 = vmul.f32 %v228, %v228
    %v233 = vmul.f32 %v229, %v229
    %v234 = vmul.f32 %v230, %v230
    %v235 = vsel %vm195, %v231, 0.0
    %236 = vadd.xlane.f32.xlu0 %v235
    %v237 = vpop.xlane.xlu0 %236
    %v238 = vsel %vm195, %v232, 0.0
    %239 = vadd.xlane.f32.xlu0 %v238
    %v240 = vpop.xlane.xlu0 %239
    %v241 = vsel %vm195, %v233, 0.0
    %242 = vadd.xlane.f32.xlu0 %v241
    %v243 = vpop.xlane.xlu0 %242
    %v244 = vsel %vm195, %v234, 0.0
    %245 = vadd.xlane.f32.xlu0 %v244
    %v246 = vpop.xlane.xlu0 %245
    %v247 = vld [vmem:[%s127] sm:$0x1]
    %v249 = vperm.slane %v247, 0
    %v251 = vadd.f32 %v237, %v249
    %v252 = vadd.f32 %v240, %v249
    %v253 = vadd.f32 %v243, %v249
    %v254 = vadd.f32 %v246, %v249
    %v255 = vmul.f32 %v218, 2.0
    %v256 = vmul.f32 %v220, 2.0
    %v257 = vmul.f32 %v223, 2.0
    %v258 = vmul.f32 %v225, 2.0
    %v259 = vsub.f32 %v251, %v255
    %v260 = vsub.f32 %v252, %v256
    %v261 = vsub.f32 %v253, %v257
    %v262 = vsub.f32 %v254, %v258
    %v263 = vmax.f32 %v259, 0.0
    %v264 = vmax.f32 %v260, 0.0
    %v265 = vmax.f32 %v261, 0.0
    %v266 = vmax.f32 %v262, 0.0
    %v267 = vmin.f32 %v263, 1e+30
    %v268 = vmin.f32 %v264, 1e+30
    %v269 = vmin.f32 %v265, 1e+30
    %v270 = vmin.f32 %v266, 1e+30
    %v271 = vld [vmem:[%s3] sm:$0xff]
    %v272 = vld [vmem:[%s3 + $0x8] sm:$0xff]
    %v273 = vld [vmem:[%s3 + $0x10] sm:$0xff]
    %v274 = vld [vmem:[%s3 + $0x18] sm:$0xff]
    %v275 = vld [vmem:[%s142] sm:$0x1]
    %276 = vset.pattern.permute.xlu0 0
    %277 = vperm.xlu0 %276, %v271
    %v278 = vpop.permute.xlu0 %277
    %279 = vset.pattern.permute.xlu0 0
    %280 = vperm.xlu0 %279, %v272
    %v281 = vpop.permute.xlu0 %280
    %282 = vset.pattern.permute.xlu0 0
    %283 = vperm.xlu0 %282, %v273
    %v284 = vpop.permute.xlu0 %283
    %285 = vset.pattern.permute.xlu0 0
    %286 = vperm.xlu0 %285, %v274
    %v287 = vpop.permute.xlu0 %286
    %v288 = vperm.slane %v275, 0
    %vm289 = vcmp.eq.s32.totalorder %v278, %v288
    %vm290 = vcmp.eq.s32.totalorder %v281, %v288
    %vm291 = vcmp.eq.s32.totalorder %v284, %v288
    %vm292 = vcmp.eq.s32.totalorder %v287, %v288
    %s293 = smul.u32 0, 32
    %v294 = vlaneseq
    %v295 = vand.u32 %v294, 127
    %v296 = vstv %s293
    %v297 = vadd.s32 %v296, %v295
    %v302 = vand.u32 %v267, 4294967264
    %v303 = vand.u32 %v268, 4294967264
    %v304 = vand.u32 %v269, 4294967264
    %v305 = vand.u32 %v270, 4294967264
    %v306 = vor.u32 %v302, %v297
    %v307 = vor.u32 %v303, %v297
    %v308 = vor.u32 %v304, %v297
    %v309 = vor.u32 %v305, %v297
    %v310 = vsel %vm289, %v306, 2147483647
    %v311 = vsel %vm290, %v307, 2147483647
    %v312 = vsel %vm291, %v308, 2147483647
    %v313 = vsel %vm292, %v309, 2147483647
    %v314 = vld [vmem:[#allocation2] sm:$0xff]
    %v315 = vld [vmem:[#allocation2 + $0x8] sm:$0xff]
    %v316 = vld [vmem:[#allocation2 + $0x10] sm:$0xff]
    %v317 = vld [vmem:[#allocation2 + $0x18] sm:$0xff]
    %318 = vrot.lane.b32.xlu0 %v310, 4
    %v319 = vpop.permute.xlu0 %318
    %320 = vrot.lane.b32.xlu0 %v311, 4
    %v321 = vpop.permute.xlu0 %320
    %322 = vrot.lane.b32.xlu0 %v312, 4
    %v323 = vpop.permute.xlu0 %322
    %324 = vrot.lane.b32.xlu0 %v313, 4
    %v325 = vpop.permute.xlu0 %324
    %v326 = vsel %vm195, %v314, %v319
    %v327 = vsel %vm195, %v315, %v321
    %v328 = vsel %vm195, %v316, %v323
    %v329 = vsel %vm195, %v317, %v325
    %vm330 = vcmask 293888
    %v331 = vsel %vm330, %v326, 2147483647
    %v332 = vand.u32 %v331, 65535
    %v333 = vshra.s32 %v331, 16
    %v334 = vcvt.s32.f32 %v332
    %v335 = vcvt.s32.f32 %v333
    %336 = vmin.xlane.f32.xlu0 %v335
    %v337 = vpop.xlane.xlu0 %336
    %vm338 = vcmp.eq.f32.partialorder %v335, %v337
    %v339 = vsel %vm338, %v334, inf
    %340 = vmin.xlane.f32.xlu0 %v339
    %v341 = vpop.xlane.xlu0 %340
    %v342 = vcvt.f32.s32 %v341
    %v343 = vcvt.f32.s32 %v337
    %v344 = vshll.u32 %v343, 16
    %v345 = vadd.s32 %v344, %v342
    %v346 = vsel %vm330, %v327, 2147483647
    %v347 = vand.u32 %v346, 65535
    %v348 = vshra.s32 %v346, 16
    %v349 = vcvt.s32.f32 %v347
    %v350 = vcvt.s32.f32 %v348
    %351 = vmin.xlane.f32.xlu0 %v350
    %v352 = vpop.xlane.xlu0 %351
    %vm353 = vcmp.eq.f32.partialorder %v350, %v352
    %v354 = vsel %vm353, %v349, inf
    %355 = vmin.xlane.f32.xlu0 %v354
    %v356 = vpop.xlane.xlu0 %355
    %v357 = vcvt.f32.s32 %v356
    %v358 = vcvt.f32.s32 %v352
    %v359 = vshll.u32 %v358, 16
    %v360 = vadd.s32 %v359, %v357
    %v361 = vsel %vm330, %v328, 2147483647
    %v362 = vand.u32 %v361, 65535
    %v363 = vshra.s32 %v361, 16
    %v364 = vcvt.s32.f32 %v362
    %v365 = vcvt.s32.f32 %v363
    %366 = vmin.xlane.f32.xlu0 %v365
    %v367 = vpop.xlane.xlu0 %366
    %vm368 = vcmp.eq.f32.partialorder %v365, %v367
    %v369 = vsel %vm368, %v364, inf
    %370 = vmin.xlane.f32.xlu0 %v369
    %v371 = vpop.xlane.xlu0 %370
    %v372 = vcvt.f32.s32 %v371
    %v373 = vcvt.f32.s32 %v367
    %v374 = vshll.u32 %v373, 16
    %v375 = vadd.s32 %v374, %v372
    %v376 = vsel %vm330, %v329, 2147483647
    %v377 = vand.u32 %v376, 65535
    %v378 = vshra.s32 %v376, 16
    %v379 = vcvt.s32.f32 %v377
    %v380 = vcvt.s32.f32 %v378
    %381 = vmin.xlane.f32.xlu0 %v380
    %v382 = vpop.xlane.xlu0 %381
    %vm383 = vcmp.eq.f32.partialorder %v380, %v382
    %v384 = vsel %vm383, %v379, inf
    %385 = vmin.xlane.f32.xlu0 %v384
    %v386 = vpop.xlane.xlu0 %385
    %v387 = vcvt.f32.s32 %v386
    %v388 = vcvt.f32.s32 %v382
    %v389 = vshll.u32 %v388, 16
    %v390 = vadd.s32 %v389, %v387
    %vm391 = vcmp.eq.s32.totalorder %v295, 0
    %v392 = vsel %vm391, %v345, 0
    %v393 = vsel %vm391, %v360, 0
    %v394 = vsel %vm391, %v375, 0
    %v395 = vsel %vm391, %v390, 0
    %vm396 = vcmp.eq.s32.totalorder %v326, %v345
    %vm397 = vcmp.eq.s32.totalorder %v327, %v360
    %vm398 = vcmp.eq.s32.totalorder %v328, %v375
    %vm399 = vcmp.eq.s32.totalorder %v329, %v390
    %v400 = vsel %vm396, 2147483647, %v326
    %v401 = vsel %vm397, 2147483647, %v327
    %v402 = vsel %vm398, 2147483647, %v328
    %v403 = vsel %vm399, 2147483647, %v329
    %v404 = vsel %vm330, %v400, 2147483647
    %v405 = vand.u32 %v404, 65535
    %v406 = vshra.s32 %v404, 16
    %v407 = vcvt.s32.f32 %v405
    %v408 = vcvt.s32.f32 %v406
    %409 = vmin.xlane.f32.xlu0 %v408
    %v410 = vpop.xlane.xlu0 %409
    %vm411 = vcmp.eq.f32.partialorder %v408, %v410
    %v412 = vsel %vm411, %v407, inf
    %413 = vmin.xlane.f32.xlu0 %v412
    %v414 = vpop.xlane.xlu0 %413
    %v415 = vcvt.f32.s32 %v414
    %v416 = vcvt.f32.s32 %v410
    %v417 = vshll.u32 %v416, 16
    %v418 = vadd.s32 %v417, %v415
    %v419 = vsel %vm330, %v401, 2147483647
    %v420 = vand.u32 %v419, 65535
    %v421 = vshra.s32 %v419, 16
    %v422 = vcvt.s32.f32 %v420
    %v423 = vcvt.s32.f32 %v421
    %424 = vmin.xlane.f32.xlu0 %v423
    %v425 = vpop.xlane.xlu0 %424
    %vm426 = vcmp.eq.f32.partialorder %v423, %v425
    %v427 = vsel %vm426, %v422, inf
    %428 = vmin.xlane.f32.xlu0 %v427
    %v429 = vpop.xlane.xlu0 %428
    %v430 = vcvt.f32.s32 %v429
    %v431 = vcvt.f32.s32 %v425
    %v432 = vshll.u32 %v431, 16
    %v433 = vadd.s32 %v432, %v430
    %v434 = vsel %vm330, %v402, 2147483647
    %v435 = vand.u32 %v434, 65535
    %v436 = vshra.s32 %v434, 16
    %v437 = vcvt.s32.f32 %v435
    %v438 = vcvt.s32.f32 %v436
    %439 = vmin.xlane.f32.xlu0 %v438
    %v440 = vpop.xlane.xlu0 %439
    %vm441 = vcmp.eq.f32.partialorder %v438, %v440
    %v442 = vsel %vm441, %v437, inf
    %443 = vmin.xlane.f32.xlu0 %v442
    %v444 = vpop.xlane.xlu0 %443
    %v445 = vcvt.f32.s32 %v444
    %v446 = vcvt.f32.s32 %v440
    %v447 = vshll.u32 %v446, 16
    %v448 = vadd.s32 %v447, %v445
    %v449 = vsel %vm330, %v403, 2147483647
    %v450 = vand.u32 %v449, 65535
    %v451 = vshra.s32 %v449, 16
    %v452 = vcvt.s32.f32 %v450
    %v453 = vcvt.s32.f32 %v451
    %454 = vmin.xlane.f32.xlu0 %v453
    %v455 = vpop.xlane.xlu0 %454
    %vm456 = vcmp.eq.f32.partialorder %v453, %v455
    %v457 = vsel %vm456, %v452, inf
    %458 = vmin.xlane.f32.xlu0 %v457
    %v459 = vpop.xlane.xlu0 %458
    %v460 = vcvt.f32.s32 %v459
    %v461 = vcvt.f32.s32 %v455
    %v462 = vshll.u32 %v461, 16
    %v463 = vadd.s32 %v462, %v460
    %vm464 = vcmp.eq.s32.totalorder %v295, 1
    %v465 = vsel %vm464, %v418, %v392
    %v466 = vsel %vm464, %v433, %v393
    %v467 = vsel %vm464, %v448, %v394
    %v468 = vsel %vm464, %v463, %v395
    %vm469 = vcmp.eq.s32.totalorder %v400, %v418
    %vm470 = vcmp.eq.s32.totalorder %v401, %v433
    %vm471 = vcmp.eq.s32.totalorder %v402, %v448
    %vm472 = vcmp.eq.s32.totalorder %v403, %v463
    %v473 = vsel %vm469, 2147483647, %v400
    %v474 = vsel %vm470, 2147483647, %v401
    %v475 = vsel %vm471, 2147483647, %v402
    %v476 = vsel %vm472, 2147483647, %v403
    %v477 = vsel %vm330, %v473, 2147483647
    %v478 = vand.u32 %v477, 65535
    %v479 = vshra.s32 %v477, 16
    %v480 = vcvt.s32.f32 %v478
    %v481 = vcvt.s32.f32 %v479
    %482 = vmin.xlane.f32.xlu0 %v481
    %v483 = vpop.xlane.xlu0 %482
    %vm484 = vcmp.eq.f32.partialorder %v481, %v483
    %v485 = vsel %vm484, %v480, inf
    %486 = vmin.xlane.f32.xlu0 %v485
    %v487 = vpop.xlane.xlu0 %486
    %v488 = vcvt.f32.s32 %v487
    %v489 = vcvt.f32.s32 %v483
    %v490 = vshll.u32 %v489, 16
    %v491 = vadd.s32 %v490, %v488
    %v492 = vsel %vm330, %v474, 2147483647
    %v493 = vand.u32 %v492, 65535
    %v494 = vshra.s32 %v492, 16
    %v495 = vcvt.s32.f32 %v493
    %v496 = vcvt.s32.f32 %v494
    %497 = vmin.xlane.f32.xlu0 %v496
    %v498 = vpop.xlane.xlu0 %497
    %vm499 = vcmp.eq.f32.partialorder %v496, %v498
    %v500 = vsel %vm499, %v495, inf
    %501 = vmin.xlane.f32.xlu0 %v500
    %v502 = vpop.xlane.xlu0 %501
    %v503 = vcvt.f32.s32 %v502
    %v504 = vcvt.f32.s32 %v498
    %v505 = vshll.u32 %v504, 16
    %v506 = vadd.s32 %v505, %v503
    %v507 = vsel %vm330, %v475, 2147483647
    %v508 = vand.u32 %v507, 65535
    %v509 = vshra.s32 %v507, 16
    %v510 = vcvt.s32.f32 %v508
    %v511 = vcvt.s32.f32 %v509
    %512 = vmin.xlane.f32.xlu0 %v511
    %v513 = vpop.xlane.xlu0 %512
    %vm514 = vcmp.eq.f32.partialorder %v511, %v513
    %v515 = vsel %vm514, %v510, inf
    %516 = vmin.xlane.f32.xlu0 %v515
    %v517 = vpop.xlane.xlu0 %516
    %v518 = vcvt.f32.s32 %v517
    %v519 = vcvt.f32.s32 %v513
    %v520 = vshll.u32 %v519, 16
    %v521 = vadd.s32 %v520, %v518
    %v522 = vsel %vm330, %v476, 2147483647
    %v523 = vand.u32 %v522, 65535
    %v524 = vshra.s32 %v522, 16
    %v525 = vcvt.s32.f32 %v523
    %v526 = vcvt.s32.f32 %v524
    %527 = vmin.xlane.f32.xlu0 %v526
    %v528 = vpop.xlane.xlu0 %527
    %vm529 = vcmp.eq.f32.partialorder %v526, %v528
    %v530 = vsel %vm529, %v525, inf
    %531 = vmin.xlane.f32.xlu0 %v530
    %v532 = vpop.xlane.xlu0 %531
    %v533 = vcvt.f32.s32 %v532
    %v534 = vcvt.f32.s32 %v528
    %v535 = vshll.u32 %v534, 16
    %v536 = vadd.s32 %v535, %v533
    %vm537 = vcmp.eq.s32.totalorder %v295, 2
    %v538 = vsel %vm537, %v491, %v465
    %v539 = vsel %vm537, %v506, %v466
    %v540 = vsel %vm537, %v521, %v467
    %v541 = vsel %vm537, %v536, %v468
    %vm542 = vcmp.eq.s32.totalorder %v473, %v491
    %vm543 = vcmp.eq.s32.totalorder %v474, %v506
    %vm544 = vcmp.eq.s32.totalorder %v475, %v521
    %vm545 = vcmp.eq.s32.totalorder %v476, %v536
    %v546 = vsel %vm542, 2147483647, %v473
    %v547 = vsel %vm543, 2147483647, %v474
    %v548 = vsel %vm544, 2147483647, %v475
    %v549 = vsel %vm545, 2147483647, %v476
    %v550 = vsel %vm330, %v546, 2147483647
    %v551 = vand.u32 %v550, 65535
    %v552 = vshra.s32 %v550, 16
    %v553 = vcvt.s32.f32 %v551
    %v554 = vcvt.s32.f32 %v552
    %555 = vmin.xlane.f32.xlu0 %v554
    %v556 = vpop.xlane.xlu0 %555
    %vm557 = vcmp.eq.f32.partialorder %v554, %v556
    %v558 = vsel %vm557, %v553, inf
    %559 = vmin.xlane.f32.xlu0 %v558
    %v560 = vpop.xlane.xlu0 %559
    %v561 = vcvt.f32.s32 %v560
    %v562 = vcvt.f32.s32 %v556
    %v563 = vshll.u32 %v562, 16
    %v564 = vadd.s32 %v563, %v561
    %v565 = vsel %vm330, %v547, 2147483647
    %v566 = vand.u32 %v565, 65535
    %v567 = vshra.s32 %v565, 16
    %v568 = vcvt.s32.f32 %v566
    %v569 = vcvt.s32.f32 %v567
    %570 = vmin.xlane.f32.xlu0 %v569
    %v571 = vpop.xlane.xlu0 %570
    %vm572 = vcmp.eq.f32.partialorder %v569, %v571
    %v573 = vsel %vm572, %v568, inf
    %574 = vmin.xlane.f32.xlu0 %v573
    %v575 = vpop.xlane.xlu0 %574
    %v576 = vcvt.f32.s32 %v575
    %v577 = vcvt.f32.s32 %v571
    %v578 = vshll.u32 %v577, 16
    %v579 = vadd.s32 %v578, %v576
    %v580 = vsel %vm330, %v548, 2147483647
    %v581 = vand.u32 %v580, 65535
    %v582 = vshra.s32 %v580, 16
    %v583 = vcvt.s32.f32 %v581
    %v584 = vcvt.s32.f32 %v582
    %585 = vmin.xlane.f32.xlu0 %v584
    %v586 = vpop.xlane.xlu0 %585
    %vm587 = vcmp.eq.f32.partialorder %v584, %v586
    %v588 = vsel %vm587, %v583, inf
    %589 = vmin.xlane.f32.xlu0 %v588
    %v590 = vpop.xlane.xlu0 %589
    %v591 = vcvt.f32.s32 %v590
    %v592 = vcvt.f32.s32 %v586
    %v593 = vshll.u32 %v592, 16
    %v594 = vadd.s32 %v593, %v591
    %v595 = vsel %vm330, %v549, 2147483647
    %v596 = vand.u32 %v595, 65535
    %v597 = vshra.s32 %v595, 16
    %v598 = vcvt.s32.f32 %v596
    %v599 = vcvt.s32.f32 %v597
    %600 = vmin.xlane.f32.xlu0 %v599
    %v601 = vpop.xlane.xlu0 %600
    %vm602 = vcmp.eq.f32.partialorder %v599, %v601
    %v603 = vsel %vm602, %v598, inf
    %604 = vmin.xlane.f32.xlu0 %v603
    %v605 = vpop.xlane.xlu0 %604
    %v606 = vcvt.f32.s32 %v605
    %v607 = vcvt.f32.s32 %v601
    %v608 = vshll.u32 %v607, 16
    %v609 = vadd.s32 %v608, %v606
    %vm610 = vcmp.eq.s32.totalorder %v295, 3
    %v611 = vsel %vm610, %v564, %v538
    %v612 = vsel %vm610, %v579, %v539
    %v613 = vsel %vm610, %v594, %v540
    %v614 = vsel %vm610, %v609, %v541
    %615 = vst.msk [vmem:[#allocation2] sm:$0xff] %vm195, %v611
    %616 = vst.msk [vmem:[#allocation2 + $0x8] sm:$0xff] %vm195, %v612
    %617 = vst.msk [vmem:[#allocation2 + $0x10] sm:$0xff] %vm195, %v613
    %618 = vst.msk [vmem:[#allocation2 + $0x18] sm:$0xff] %vm195, %v614
  $region29: #{tpu_custom_call.1} parent=0 // pred_fallthru
    _
  // Predicated region
  $region30: #{tpu_custom_call.1} parent=0 // pred_check
    %p619 = pneg %p150
  $region31: #{tpu_custom_call.1} parent=0 // pred_check_branch
    %621 = sbr.rel (%p619) target = $region33
  $region32: #{tpu_custom_call.1} parent=0 // pred_region
    %s622 = smul.u32 0, 32
    %v623 = vlaneseq
    %v624 = vshrl.u32 %v623, 7
    %v625 = vadd.s32 %v624, 8
    %v626 = vadd.s32 %v624, 16
    %v627 = vadd.s32 %v624, 24
    %v628 = vstv %s622
    %v629 = vadd.s32 %v628, %v624
    %v630 = vadd.s32 %v628, %v625
    %v631 = vadd.s32 %v628, %v626
    %v632 = vadd.s32 %v628, %v627
    %v633 = vld [vmem:[#allocation2] sm:$0xff]
    %v634 = vld [vmem:[#allocation2 + $0x8] sm:$0xff]
    %v635 = vld [vmem:[#allocation2 + $0x10] sm:$0xff]
    %v636 = vld [vmem:[#allocation2 + $0x18] sm:$0xff]
    %vm637 = vcmp.eq.s32.totalorder %v633, 2147483647
    %vm638 = vcmp.eq.s32.totalorder %v634, 2147483647
    %vm639 = vcmp.eq.s32.totalorder %v635, 2147483647
    %vm640 = vcmp.eq.s32.totalorder %v636, 2147483647
    %v641 = vand.u32 %v633, 31
    %v642 = vand.u32 %v634, 31
    %v643 = vand.u32 %v635, 31
    %v644 = vand.u32 %v636, 31
    %v645 = vsel %vm637, %v629, %v641
    %v646 = vsel %vm638, %v630, %v642
    %v647 = vsel %vm639, %v631, %v643
    %v648 = vsel %vm640, %v632, %v644
    %vm649 = vcmask 31744
    %650 = vst.msk [vmem:[%s7] sm:$0xff] %vm649, %v645
    %651 = vst.msk [vmem:[%s7 + $0x8] sm:$0xff] %vm649, %v646
    %652 = vst.msk [vmem:[%s7 + $0x10] sm:$0xff] %vm649, %v647
    %653 = vst.msk [vmem:[%s7 + $0x18] sm:$0xff] %vm649, %v648
  $region33: #{tpu_custom_call.1} parent=0 // pred_fallthru
    _
  // Predicated region
  $region34: #{tpu_custom_call.1} parent=0 // pred_check
    _
  $region35: #{tpu_custom_call.1} parent=0 // pred_check_branch
    %655 = sbr.rel (0) target = $region37
  $region36: #{tpu_custom_call.1} parent=0 // pred_region
    _
  $region37: #{tpu_custom_call.1} parent=0 // pred_fallthru
    _
  // Predicated region
  $region38: #{tpu_custom_call.1} parent=0 // pred_check
    _
  $region39: #{tpu_custom_call.1} parent=0 // pred_check_branch
    %657 = sbr.rel (0) target = $region41
  $region40: #{tpu_custom_call.1} parent=0 // pred_region
    _
  $region41: #{tpu_custom_call.1} parent=0 // pred_fallthru
    _

</llo_original>
